<compile_context>
chip_gen: v6e
topology: v6e:2x2x1
jax: 0.10.0
libtpu: 0.0.40
codegen_flags: <defaults>
</compile_context>

<pallas_src>
import functools

import jax
import jax.numpy as jnp
from jax import lax
from jax.experimental import pallas as pl
from jax.experimental.pallas import tpu as pltpu

_LANES = 128
_SUBLANES = 8
# ~2 MiB of f32 per input per grid step (per core).  Footprint:
#   4 inputs x 2 pipeline buffers x ~2 MiB + tiny (B,C,1) accumulators ~ 17 MiB
# which fits the 32 MiB scoped-VMEM limit requested below on all generations.
_TARGET_BLOCK_ELEMS = 512 * 1024
_VMEM_LIMIT_FLOOR = 32 * 1024 * 1024
_VMEM_LIMIT_CEIL = 64 * 1024 * 1024


def _round_up(x, m):
    return ((x + m - 1) // m) * m


def _as_3d(x):
    """Canonicalize to (B, C, T); only leading dims change (layout-free)."""
    if x.ndim == 1:
        return x.reshape(1, 1, x.shape[0])
    if x.ndim == 2:
        return x.reshape(1, x.shape[0], x.shape[1])
    if x.ndim == 3:
        return x
    return x.reshape((-1,) + x.shape[-2:])


def _num_tensorcores():
    """Best-effort TensorCores-per-chip (2 on v7x, 1 on v5e/v6e). Conservative:
    defaults to 1 on any doubt so single-TC chips never see CORE_PARALLEL."""
    cores = 1
    try:
        info = pltpu.get_tpu_info()
        for attr in ("num_cores", "tensor_cores_per_chip", "num_tensorcores",
                     "tensorcore_count", "cores_per_chip"):
            v = getattr(info, attr, None)
            if isinstance(v, int) and v >= 1:
                cores = v
                break
    except Exception:
        pass
    if cores == 1:
        try:
            kind = jax.devices()[0].device_kind.lower()
            if "v7" in kind or "7x" in kind:
                cores = 2
        except Exception:
            pass
    return max(1, min(int(cores), 2))


def _kl_kernel(*refs, tiles_per_core, t_tile, t_total, compute_reg):
    mu_q_ref, logs_q_ref, mu_p_ref, logs_p_ref = refs[:4]
    if compute_reg:
        kl_out_ref, reg_out_ref, kl_acc, reg_acc = refs[4:]
    else:
        kl_out_ref, kl_acc = refs[4:]
        reg_out_ref = reg_acc = None

    c = pl.program_id(0)   # TensorCore / outer axis (size 1 on 1-TC chips)
    i = pl.program_id(1)   # reduction axis over time tiles

    @pl.when(i == 0)
    def _init():
        kl_acc[...] = jnp.zeros_like(kl_acc)
        if compute_reg:
            reg_acc[...] = jnp.zeros_like(reg_acc)

    blk_shape = mu_q_ref.shape  # (B, C, t_tile)
    # Global time index of every element in this (possibly ragged / phantom)
    # tile.  Invalid elements are removed with a true select (NOT a multiply
    # mask) so garbage in the padded tail can't poison the sums via exp().
    t0 = (c * tiles_per_core + i) * t_tile
    t_ids = t0 + lax.broadcasted_iota(jnp.int32, blk_shape, len(blk_shape) - 1)
    valid = t_ids < t_total

    # Inputs may be bf16/f16; upcast in-register, accumulate in f32.
    mu_q = mu_q_ref[...].astype(jnp.float32)
    logs_q = logs_q_ref[...].astype(jnp.float32)
    mu_p = mu_p_ref[...].astype(jnp.float32)
    logs_p = logs_p_ref[...].astype(jnp.float32)

    dlogs = logs_p - logs_q
    kl = (
        dlogs
        + 0.5 * (jnp.exp(2.0 * logs_q) + jnp.square(mu_q - mu_p)) * jnp.exp(-2.0 * logs_p)
        - 0.5
    )

    # Per-step reduce along the (lane) time axis into tiny (B, C, 1)
    # accumulators: frees 2 x block_bytes of VMEM vs. full-tile accumulators.
    kl_acc[...] += jnp.sum(jnp.where(valid, kl, 0.0), axis=-1, keepdims=True)
    if compute_reg:
        reg_acc[...] += jnp.sum(jnp.where(valid, jnp.square(dlogs), 0.0),
                                axis=-1, keepdims=True)

    @pl.when(i == tiles_per_core - 1)
    def _finalize():
        kl_out_ref[0, 0] = jnp.sum(kl_acc[...])
        if compute_reg:
            reg_out_ref[0, 0] = jnp.sum(reg_acc[...])


def kl_loss(mu_q, logs_q, mu_p, logs_p, regularization=True, size_average=True,
            target_block_elems=_TARGET_BLOCK_ELEMS):
    """Pallas implementation of KL_Loss.forward (purely HBM-bound streaming
    reduction).  Pass inputs in their native dtype (bf16 halves HBM traffic)."""
    n = mu_q.size
    xs = [_as_3d(a) for a in (mu_q, logs_q, mu_p, logs_p)]
    B, C, T = xs[0].shape
    compute_reg = bool(regularization)

    num_cores = _num_tensorcores()          # 2 on v7x, 1 on v5e / v6e

    # Time-tile size: ~target_block_elems per input per step, accounting for
    # the sublane padding of C in VMEM; a multiple of 128 lanes and never
    # (much) bigger than T itself.
    pad_c = _round_up(C, _SUBLANES)
    t_tile = max(_LANES,
                 (target_block_elems // max(1, B * pad_c)) // _LANES * _LANES)
    t_tile = min(t_tile, _round_up(T, _LANES))

    num_t_tiles = int(pl.cdiv(T, t_tile))
    tiles_per_core = int(pl.cdiv(num_t_tiles, num_cores))
    grid = (num_cores, tiles_per_core)

    # Only pay for the phantom-tile clamp when the core split leaves a hole
    # (never on single-TC chips, where the leading axis has size 1).
    if num_cores * tiles_per_core > num_t_tiles:
        def in_map(c, i):
            return (0, 0, jnp.minimum(c * tiles_per_core + i, num_t_tiles - 1))
    else:
        def in_map(c, i):
            return (0, 0, c * tiles_per_core + i)

    elem_spec = pl.BlockSpec((B, C, t_tile), in_map)
    out_spec = pl.BlockSpec((1, 1), lambda c, i: (c, 0), memory_space=pltpu.SMEM)

    out_shapes = [jax.ShapeDtypeStruct((num_cores, 1), jnp.float32)]
    out_specs = [out_spec]
    scratch_shapes = [pltpu.VMEM((B, C, 1), jnp.float32)]
    if compute_reg:
        out_shapes.append(jax.ShapeDtypeStruct((num_cores, 1), jnp.float32))
        out_specs.append(out_spec)
        scratch_shapes.append(pltpu.VMEM((B, C, 1), jnp.float32))

    kernel = functools.partial(
        _kl_kernel,
        tiles_per_core=tiles_per_core,
        t_tile=t_tile,
        t_total=T,
        compute_reg=compute_reg,
    )

    itemsize = max(jnp.dtype(x.dtype).itemsize for x in xs)
    block_vmem_bytes = B * pad_c * t_tile * itemsize
    vmem_limit = int(min(max(_VMEM_LIMIT_FLOOR, 8 * block_vmem_bytes + (2 << 20)),
                         _VMEM_LIMIT_CEIL))

    # Purely HBM-bound: ~4*itemsize B read per element, ~nothing written.
    cost = pl.CostEstimate(
        flops=int(15 * n),
        transcendentals=int(2 * n),
        bytes_accessed=int(sum(x.size * jnp.dtype(x.dtype).itemsize for x in xs)),
    )

    dim_sem = (pltpu.CORE_PARALLEL if num_cores > 1 else pltpu.ARBITRARY,
               pltpu.ARBITRARY)

    results = pl.pallas_call(
        kernel,
        out_shape=tuple(out_shapes),
        grid_spec=pltpu.PrefetchScalarGridSpec(
            num_scalar_prefetch=0,
            grid=grid,
            in_specs=[elem_spec, elem_spec, elem_spec, elem_spec],
            out_specs=tuple(out_specs),
            scratch_shapes=scratch_shapes,
        ),
        compiler_params=pltpu.CompilerParams(
            dimension_semantics=dim_sem,
            vmem_limit_bytes=vmem_limit,
        ),
        cost_estimate=cost,
    )(*xs)

    if not isinstance(results, (tuple, list)):
        results = (results,)
    kl_sum = jnp.sum(results[0])
    if compute_reg:
        reg_sum = jnp.sum(results[1])
    else:
        # TODO(synk): original code returns None for reg_loss when
        # regularization=False (which would break loss_tot); we use zeros.
        reg_sum = jnp.float32(0.0)

    if size_average:
        kl_stat = kl_sum / n
        reg_stat = reg_sum / n
    else:
        kl_stat = kl_sum
        reg_stat = reg_sum
    loss_tot = kl_stat + reg_stat * 4.0
    return loss_tot, kl_stat, reg_stat


def _reference(mu_q, logs_q, mu_p, logs_p):
    dlogs = logs_p - logs_q
    kl = dlogs + 0.5 * (jnp.exp(2.0 * logs_q) + (mu_q - mu_p) ** 2) * jnp.exp(-2.0 * logs_p) - 0.5
    reg = dlogs ** 2
    tot = kl + 4.0 * reg
    return tot.mean(), kl.mean(), reg.mean()


if __name__ == "__main__":
    key = jax.random.PRNGKey(0)
    k1, k2, k3, k4 = jax.random.split(key, 4)
    shape = (2, 4, 200)  # (batch, channels, time); odd T exercises the ragged masked tile
    mu_q = jax.random.normal(k1, shape, dtype=jnp.float32)
    logs_q = 0.1 * jax.random.normal(k2, shape, dtype=jnp.float32) - 0.5
    mu_p = jax.random.normal(k3, shape, dtype=jnp.float32)
    logs_p = 0.1 * jax.random.normal(k4, shape, dtype=jnp.float32) - 0.5

    ref_tot, ref_kl, ref_reg = _reference(mu_q, logs_q, mu_p, logs_p)

    # 1) default config (single time tile)
    out = jax.block_until_ready(kl_loss(mu_q, logs_q, mu_p, logs_p))
    for got, want in zip(out, (ref_tot, ref_kl, ref_reg)):
        assert jnp.allclose(got, want, rtol=1e-5, atol=1e-5), (got, want)

    # 2) tiny blocks: multiple time tiles + ragged last tile
    out = jax.block_until_ready(
        kl_loss(mu_q, logs_q, mu_p, logs_p, target_block_elems=2048))
    for got, want in zip(out, (ref_tot, ref_kl, ref_reg)):
        assert jnp.allclose(got, want, rtol=1e-5, atol=1e-5), (got, want)

    # 3) size_average=False (sums instead of means)
    out = jax.block_until_ready(
        kl_loss(mu_q, logs_q, mu_p, logs_p, size_average=False))
    n = mu_q.size
    for got, want in zip(out, (ref_tot * n, ref_kl * n, ref_reg * n)):
        assert jnp.allclose(got, want, rtol=1e-5, atol=1e-3), (got, want)

    # 4) regularization=False (single-output pallas_call variant)
    out = jax.block_until_ready(
        kl_loss(mu_q, logs_q, mu_p, logs_p, regularization=False))
    assert jnp.allclose(out[0], ref_kl, rtol=1e-5, atol=1e-5), (out[0], ref_kl)
    assert jnp.allclose(out[1], ref_kl, rtol=1e-5, atol=1e-5), (out[1], ref_kl)
    assert jnp.allclose(out[2], 0.0)

    print("KERNEL_OK")
</pallas_src>

<mosaic_0001>
module attributes {stable_mosaic.version = 11 : i64} {
  func.func @_kl_kernel(%arg0: i32, %arg1: i32, %arg2: memref<2x4x256xf32, #tpu.memory_space<vmem>>, %arg3: memref<2x4x256xf32, #tpu.memory_space<vmem>>, %arg4: memref<2x4x256xf32, #tpu.memory_space<vmem>>, %arg5: memref<2x4x256xf32, #tpu.memory_space<vmem>>, %arg6: memref<1x1xf32, #tpu.memory_space<smem>>, %arg7: memref<1x1xf32, #tpu.memory_space<smem>>, %arg8: memref<2x4x1xf32, #tpu.memory_space<vmem>>, %arg9: memref<2x4x1xf32, #tpu.memory_space<vmem>>) attributes {dimension_semantics = [#tpu.dimension_semantics<arbitrary>, #tpu.dimension_semantics<arbitrary>], iteration_bounds = array<i64: 1, 1>, scalar_prefetch = 0 : i64, scratch_operands = 2 : i64, tpu.core_type = #tpu.core_type<tc>, window_params = [{transform_indices = @transform_0, window_bounds = array<i64: 2, 4, 256>}, {transform_indices = @transform_1, window_bounds = array<i64: 2, 4, 256>}, {transform_indices = @transform_2, window_bounds = array<i64: 2, 4, 256>}, {transform_indices = @transform_3, window_bounds = array<i64: 2, 4, 256>}, {transform_indices = @transform_4, window_bounds = array<i64: 1, 1>}, {transform_indices = @transform_5, window_bounds = array<i64: 1, 1>}]} {
    %c0_i32 = arith.constant 0 : i32
    %0 = arith.cmpi eq, %arg1, %c0_i32 : i32
    %1 = arith.extui %0 : i1 to i32
    %c0_i32_0 = arith.constant 0 : i32
    %2 = arith.cmpi ne, %1, %c0_i32_0 : i32
    scf.if %2 {
      %cst_33 = arith.constant 0.000000e+00 : f32
      %49 = vector.broadcast %cst_33 : f32 to vector<2x4x1xf32>
      %c0_34 = arith.constant 0 : index
      %c0_35 = arith.constant 0 : index
      %c0_36 = arith.constant 0 : index
      %50 = vector.load %arg8[%c0_34, %c0_35, %c0_36] : memref<2x4x1xf32, #tpu.memory_space<vmem>>, vector<2x4x1xf32>
      tpu.vector_store %arg8[%c0_34, %c0_35, %c0_36], %49 {strides = array<i32>} : memref<2x4x1xf32, #tpu.memory_space<vmem>>, vector<2x4x1xf32>,
      %cst_37 = arith.constant 0.000000e+00 : f32
      %51 = vector.broadcast %cst_37 : f32 to vector<2x4x1xf32>
      %c0_38 = arith.constant 0 : index
      %c0_39 = arith.constant 0 : index
      %c0_40 = arith.constant 0 : index
      %52 = vector.load %arg9[%c0_38, %c0_39, %c0_40] : memref<2x4x1xf32, #tpu.memory_space<vmem>>, vector<2x4x1xf32>
      tpu.vector_store %arg9[%c0_38, %c0_39, %c0_40], %51 {strides = array<i32>} : memref<2x4x1xf32, #tpu.memory_space<vmem>>, vector<2x4x1xf32>,
    } else {
    }
    %c1_i32 = arith.constant 1 : i32
    %3 = arith.muli %arg0, %c1_i32 : i32
    %4 = arith.addi %3, %arg1 : i32
    %c256_i32 = arith.constant 256 : i32
    %5 = arith.muli %4, %c256_i32 : i32
    %6 = tpu.iota {dimensions = array<i32: 2>} : vector<2x4x256xi32>
    %7 = vector.broadcast %5 : i32 to vector<2x4x256xi32>
    %8 = arith.addi %7, %6 : vector<2x4x256xi32>
    %c200_i32 = arith.constant 200 : i32
    %9 = vector.broadcast %c200_i32 : i32 to vector<2x4x256xi32>
    %10 = arith.cmpi slt, %8, %9 : vector<2x4x256xi32>
    %c0 = arith.constant 0 : index
    %c0_1 = arith.constant 0 : index
    %c0_2 = arith.constant 0 : index
    %11 = vector.load %arg2[%c0, %c0_1, %c0_2] : memref<2x4x256xf32, #tpu.memory_space<vmem>>, vector<2x4x256xf32>
    %c0_3 = arith.constant 0 : index
    %c0_4 = arith.constant 0 : index
    %c0_5 = arith.constant 0 : index
    %12 = vector.load %arg3[%c0_3, %c0_4, %c0_5] : memref<2x4x256xf32, #tpu.memory_space<vmem>>, vector<2x4x256xf32>
    %c0_6 = arith.constant 0 : index
    %c0_7 = arith.constant 0 : index
    %c0_8 = arith.constant 0 : index
    %13 = vector.load %arg4[%c0_6, %c0_7, %c0_8] : memref<2x4x256xf32, #tpu.memory_space<vmem>>, vector<2x4x256xf32>
    %c0_9 = arith.constant 0 : index
    %c0_10 = arith.constant 0 : index
    %c0_11 = arith.constant 0 : index
    %14 = vector.load %arg5[%c0_9, %c0_10, %c0_11] : memref<2x4x256xf32, #tpu.memory_space<vmem>>, vector<2x4x256xf32>
    %15 = arith.subf %14, %12 : vector<2x4x256xf32>
    %cst = arith.constant 2.000000e+00 : f32
    %16 = vector.broadcast %cst : f32 to vector<2x4x256xf32>
    %17 = arith.mulf %16, %12 : vector<2x4x256xf32>
    %18 = math.exp %17 : vector<2x4x256xf32>
    %19 = arith.subf %11, %13 : vector<2x4x256xf32>
    %20 = arith.mulf %19, %19 : vector<2x4x256xf32>
    %21 = arith.addf %18, %20 : vector<2x4x256xf32>
    %cst_12 = arith.constant 5.000000e-01 : f32
    %22 = vector.broadcast %cst_12 : f32 to vector<2x4x256xf32>
    %23 = arith.mulf %22, %21 : vector<2x4x256xf32>
    %cst_13 = arith.constant -2.000000e+00 : f32
    %24 = vector.broadcast %cst_13 : f32 to vector<2x4x256xf32>
    %25 = arith.mulf %24, %14 : vector<2x4x256xf32>
    %26 = math.exp %25 : vector<2x4x256xf32>
    %27 = arith.mulf %23, %26 : vector<2x4x256xf32>
    %28 = arith.addf %15, %27 : vector<2x4x256xf32>
    %cst_14 = arith.constant 5.000000e-01 : f32
    %29 = vector.broadcast %cst_14 : f32 to vector<2x4x256xf32>
    %30 = arith.subf %28, %29 : vector<2x4x256xf32>
    %c0_15 = arith.constant 0 : index
    %c0_16 = arith.constant 0 : index
    %c0_17 = arith.constant 0 : index
    %31 = vector.load %arg8[%c0_15, %c0_16, %c0_17] : memref<2x4x1xf32, #tpu.memory_space<vmem>>, vector<2x4x1xf32>
    %cst_18 = arith.constant 0.000000e+00 : f32
    %32 = vector.broadcast %cst_18 : f32 to vector<2x4x256xf32>
    %33 = arith.select %10, %30, %32 : vector<2x4x256xi1>, vector<2x4x256xf32>
    %cst_19 = arith.constant dense<0.000000e+00> : vector<2x4xf32>
    %34 = vector.multi_reduction <add>, %33, %cst_19 [2] : vector<2x4x256xf32> to vector<2x4xf32>
    %35 = vector.shape_cast %34 : vector<2x4xf32> to vector<2x4x1xf32>
    %36 = arith.addf %31, %35 : vector<2x4x1xf32>
    %c0_20 = arith.constant 0 : index
    %c0_21 = arith.constant 0 : index
    %c0_22 = arith.constant 0 : index
    %37 = vector.load %arg8[%c0_20, %c0_21, %c0_22] : memref<2x4x1xf32, #tpu.memory_space<vmem>>, vector<2x4x1xf32>
    tpu.vector_store %arg8[%c0_20, %c0_21, %c0_22], %36 {strides = array<i32>} : memref<2x4x1xf32, #tpu.memory_space<vmem>>, vector<2x4x1xf32>,
    %c0_23 = arith.constant 0 : index
    %c0_24 = arith.constant 0 : index
    %c0_25 = arith.constant 0 : index
    %38 = vector.load %arg9[%c0_23, %c0_24, %c0_25] : memref<2x4x1xf32, #tpu.memory_space<vmem>>, vector<2x4x1xf32>
    %39 = arith.mulf %15, %15 : vector<2x4x256xf32>
    %cst_26 = arith.constant 0.000000e+00 : f32
    %40 = vector.broadcast %cst_26 : f32 to vector<2x4x256xf32>
    %41 = arith.select %10, %39, %40 : vector<2x4x256xi1>, vector<2x4x256xf32>
    %cst_27 = arith.constant dense<0.000000e+00> : vector<2x4xf32>
    %42 = vector.multi_reduction <add>, %41, %cst_27 [2] : vector<2x4x256xf32> to vector<2x4xf32>
    %43 = vector.shape_cast %42 : vector<2x4xf32> to vector<2x4x1xf32>
    %44 = arith.addf %38, %43 : vector<2x4x1xf32>
    %c0_28 = arith.constant 0 : index
    %c0_29 = arith.constant 0 : index
    %c0_30 = arith.constant 0 : index
    %45 = vector.load %arg9[%c0_28, %c0_29, %c0_30] : memref<2x4x1xf32, #tpu.memory_space<vmem>>, vector<2x4x1xf32>
    tpu.vector_store %arg9[%c0_28, %c0_29, %c0_30], %44 {strides = array<i32>} : memref<2x4x1xf32, #tpu.memory_space<vmem>>, vector<2x4x1xf32>,
    %c0_i32_31 = arith.constant 0 : i32
    %46 = arith.cmpi eq, %arg1, %c0_i32_31 : i32
    %47 = arith.extui %46 : i1 to i32
    %c0_i32_32 = arith.constant 0 : i32
    %48 = arith.cmpi ne, %47, %c0_i32_32 : i32
    scf.if %48 {
      %c0_33 = arith.constant 0 : index
      %c0_34 = arith.constant 0 : index
      %c0_35 = arith.constant 0 : index
      %49 = vector.load %arg8[%c0_33, %c0_34, %c0_35] : memref<2x4x1xf32, #tpu.memory_space<vmem>>, vector<2x4x1xf32>
      %50 = vector.shape_cast %49 : vector<2x4x1xf32> to vector<1x2x4x1xf32>
      %cst_36 = arith.constant dense<0.000000e+00> : vector<1xf32>
      %51 = vector.multi_reduction <add>, %50, %cst_36 [1, 2, 3] : vector<1x2x4x1xf32> to vector<1xf32>
      %52 = vector.shape_cast %51 : vector<1xf32> to vector<1x1x1x1xf32>
      %53 = vector.extract %52[0, 0, 0, 0] : f32 from vector<1x1x1x1xf32>
      %c0_37 = arith.constant 0 : index
      %c0_38 = arith.constant 0 : index
      %54 = memref.load %arg6[%c0_37, %c0_38] : memref<1x1xf32, #tpu.memory_space<smem>>
      memref.store %53, %arg6[%c0_37, %c0_38] : memref<1x1xf32, #tpu.memory_space<smem>>
      %c0_39 = arith.constant 0 : index
      %c0_40 = arith.constant 0 : index
      %c0_41 = arith.constant 0 : index
      %55 = vector.load %arg9[%c0_39, %c0_40, %c0_41] : memref<2x4x1xf32, #tpu.memory_space<vmem>>, vector<2x4x1xf32>
      %56 = vector.shape_cast %55 : vector<2x4x1xf32> to vector<1x2x4x1xf32>
      %cst_42 = arith.constant dense<0.000000e+00> : vector<1xf32>
      %57 = vector.multi_reduction <add>, %56, %cst_42 [1, 2, 3] : vector<1x2x4x1xf32> to vector<1xf32>
      %58 = vector.shape_cast %57 : vector<1xf32> to vector<1x1x1x1xf32>
      %59 = vector.extract %58[0, 0, 0, 0] : f32 from vector<1x1x1x1xf32>
      %c0_43 = arith.constant 0 : index
      %c0_44 = arith.constant 0 : index
      %60 = memref.load %arg7[%c0_43, %c0_44] : memref<1x1xf32, #tpu.memory_space<smem>>
      memref.store %59, %arg7[%c0_43, %c0_44] : memref<1x1xf32, #tpu.memory_space<smem>>
    } else {
    }
    return
  }
  func.func @transform_0(%arg0: i32, %arg1: i32) -> (i32, i32, i32) {
    %c1_i32 = arith.constant 1 : i32
    %0 = arith.muli %arg0, %c1_i32 : i32
    %1 = arith.addi %0, %arg1 : i32
    %c0_i32 = arith.constant 0 : i32
    %c0_i32_0 = arith.constant 0 : i32
    %c0_i32_1 = arith.constant 0 : i32
    return %c0_i32, %c0_i32_0, %1 : i32, i32, i32
  }
  func.func @transform_1(%arg0: i32, %arg1: i32) -> (i32, i32, i32) {
    %c1_i32 = arith.constant 1 : i32
    %0 = arith.muli %arg0, %c1_i32 : i32
    %1 = arith.addi %0, %arg1 : i32
    %c0_i32 = arith.constant 0 : i32
    %c0_i32_0 = arith.constant 0 : i32
    %c0_i32_1 = arith.constant 0 : i32
    return %c0_i32, %c0_i32_0, %1 : i32, i32, i32
  }
  func.func @transform_2(%arg0: i32, %arg1: i32) -> (i32, i32, i32) {
    %c1_i32 = arith.constant 1 : i32
    %0 = arith.muli %arg0, %c1_i32 : i32
    %1 = arith.addi %0, %arg1 : i32
    %c0_i32 = arith.constant 0 : i32
    %c0_i32_0 = arith.constant 0 : i32
    %c0_i32_1 = arith.constant 0 : i32
    return %c0_i32, %c0_i32_0, %1 : i32, i32, i32
  }
  func.func @transform_3(%arg0: i32, %arg1: i32) -> (i32, i32, i32) {
    %c1_i32 = arith.constant 1 : i32
    %0 = arith.muli %arg0, %c1_i32 : i32
    %1 = arith.addi %0, %arg1 : i32
    %c0_i32 = arith.constant 0 : i32
    %c0_i32_0 = arith.constant 0 : i32
    %c0_i32_1 = arith.constant 0 : i32
    return %c0_i32, %c0_i32_0, %1 : i32, i32, i32
  }
  func.func @transform_4(%arg0: i32, %arg1: i32) -> (i32, i32) {
    %c0_i32 = arith.constant 0 : i32
    %c0_i32_0 = arith.constant 0 : i32
    return %arg0, %c0_i32 : i32, i32
  }
  func.func @transform_5(%arg0: i32, %arg1: i32) -> (i32, i32) {
    %c0_i32 = arith.constant 0 : i32
    %c0_i32_0 = arith.constant 0 : i32
    return %arg0, %c0_i32 : i32, i32
  }
}

</mosaic_0001>

<llo_original>
// kernel: tpu_custom_call.1
$region0: #{tpu_custom_call.1}
  #allocation0 [shape = 'u32[]', space=smem, size = 0x4, offset = 0x4, fixed_abs, tag = 'smem constant byte address 0x4 - core index']
  #allocation1 [shape = 'u32[144,128]{1,0:T(1,128)}', space=vmem, size = 0x12000, scoped, tag = 'internal scratch']
  #allocation2 [shape = 'f32[2,4,1]{2,1,0:T(4,128)}', space=vmem, size = 0x1000, scoped, tag = 'scratch operand']
  #allocation3 [shape = 'f32[2,4,1]{2,1,0:T(4,128)}', space=vmem, size = 0x1000, scoped, tag = 'scratch operand']
  %s0 = inlined_call_operand.hbm [shape: f32[2,4,200], index: 0, kind: input, shape index: {}]
  %s1 = inlined_call_operand.hbm [shape: f32[2,4,200], index: 1, kind: input, shape index: {}]
  %s2 = inlined_call_operand.hbm [shape: f32[2,4,200], index: 2, kind: input, shape index: {}]
  %s3 = inlined_call_operand.hbm [shape: f32[2,4,200], index: 3, kind: input, shape index: {}]
  %s4 = inlined_call_operand.hbm [shape: f32[1,1], index: 4, kind: output, shape index: {0}]
  %s5 = inlined_call_operand.hbm [shape: f32[1,1], index: 5, kind: output, shape index: {1}]
  %6 = xla_tuple %s4, %s5
  %s7 = sld [smem:[#allocation0]]
  $region58: #{tpu_custom_call.1} parent=0
    _
  %s9 = ssub.s32 1, %s7
  %s10 = scalar_select 0, %s9, %s7
  $region1: #{tpu_custom_call.1} parent=0
    #allocation4 [shape = 'u8[8192]{0}', space=vmem, size = 0x2000, scoped, tag = 'input window, operand 0, single buffered']
    #allocation5 [shape = 's32[1]{0}', space=sflag, size = 0x4, scoped, tag = 'scoped memory for tpu_custom_call.1']
    #allocation6 [shape = 's32[1]{0}', space=sflag, size = 0x4, scoped, tag = 'scoped memory for tpu_custom_call.1']
    #allocation7 [shape = 'u8[8192]{0}', space=vmem, size = 0x2000, scoped, tag = 'input window, operand 1, single buffered']
    #allocation8 [shape = 's32[1]{0}', space=sflag, size = 0x4, scoped, tag = 'scoped memory for tpu_custom_call.1']
    #allocation9 [shape = 'u8[8192]{0}', space=vmem, size = 0x2000, scoped, tag = 'input window, operand 2, single buffered']
    #allocation10 [shape = 'u8[8192]{0}', space=vmem, size = 0x2000, scoped, tag = 'input window, operand 3, single buffered']
    #allocation11 [shape = 's32[1]{0}', space=sflag, size = 0x4, scoped, tag = 'scoped memory for tpu_custom_call.1']
    #allocation12 [shape = 'u8[512]{0}', space=smem, size = 0x200, scoped, tag = 'output window, operand 0, single buffered']
    #allocation13 [shape = 'u8[512]{0}', space=smem, size = 0x200, scoped, tag = 'output window, operand 1, single buffered']
    #allocation14 [shape = 's32[1]{0}', space=sflag, size = 0x4, scoped, tag = 'scoped memory for tpu_custom_call.1']
    %11 = vsyncpa [#allocation5], 0
    %12 = vsyncpa [#allocation8], 0
    %13 = vsyncpa [#allocation11], 0
    %14 = vsyncpa [#allocation6], 0
    %15 = vsyncpa [#allocation14], 0
    // Predicated region
    $region2: #{tpu_custom_call.1} parent=1 // pred_check
      _
    $region3: #{tpu_custom_call.1} parent=1 // pred_check_branch
      %17 = sbr.rel (0) target = $region5
    $region4: #{tpu_custom_call.1} parent=1 // pred_region
      %s18 = sadd.s32 0, 0
      %s19 = smul.u32 2, %s18
      %s21 = ssub.s32 256, 256
      %22 = vsyncadd [#allocation5], %s21
      %s23 = smul.addr %s19, 64
      %s24 = scalar_lea.hbm %s0, %s23
      %s25 = sshll.u32 [#allocation4], 4
      %s26 = int_to_ptr.vmem [resolvable:$true] %s25
      %31 = dma.hbm_to_vmem [thread:$0]  %s24, 256, %s26, [#allocation5], 128, 128, 8
    $region5: #{tpu_custom_call.1} parent=1 // pred_fallthru
      _
    // Predicated region
    $region6: #{tpu_custom_call.1} parent=1 // pred_check
      _
    $region7: #{tpu_custom_call.1} parent=1 // pred_check_branch
      %33 = sbr.rel (0) target = $region9
    $region8: #{tpu_custom_call.1} parent=1 // pred_region
      %s34 = sadd.s32 0, 0
      %s35 = smul.u32 2, %s34
      %s37 = ssub.s32 256, 256
      %38 = vsyncadd [#allocation8], %s37
      %s39 = smul.addr %s35, 64
      %s40 = scalar_lea.hbm %s1, %s39
      %s41 = sshll.u32 [#allocation7], 4
      %s42 = int_to_ptr.vmem [resolvable:$true] %s41
      %47 = dma.hbm_to_vmem [thread:$0]  %s40, 256, %s42, [#allocation8], 128, 128, 8
    $region9: #{tpu_custom_call.1} parent=1 // pred_fallthru
      _
    // Predicated region
    $region10: #{tpu_custom_call.1} parent=1 // pred_check
      _
    $region11: #{tpu_custom_call.1} parent=1 // pred_check_branch
      %49 = sbr.rel (0) target = $region13
    $region12: #{tpu_custom_call.1} parent=1 // pred_region
      %s50 = sadd.s32 0, 0
      %s51 = smul.u32 2, %s50
      %s53 = ssub.s32 256, 256
      %54 = vsyncadd [#allocation8], %s53
      %s55 = smul.addr %s51, 64
      %s56 = scalar_lea.hbm %s2, %s55
      %s57 = sshll.u32 [#allocation9], 4
      %s58 = int_to_ptr.vmem [resolvable:$true] %s57
      %63 = dma.hbm_to_vmem [thread:$0]  %s56, 256, %s58, [#allocation8], 128, 128, 8
    $region13: #{tpu_custom_call.1} parent=1 // pred_fallthru
      _
    // Predicated region
    $region14: #{tpu_custom_call.1} parent=1 // pred_check
      _
    $region15: #{tpu_custom_call.1} parent=1 // pred_check_branch
      %65 = sbr.rel (0) target = $region17
    $region16: #{tpu_custom_call.1} parent=1 // pred_region
      %s66 = sadd.s32 0, 0
      %s67 = smul.u32 2, %s66
      %s69 = ssub.s32 256, 256
      %70 = vsyncadd [#allocation11], %s69
      %s71 = smul.addr %s67, 64
      %s72 = scalar_lea.hbm %s3, %s71
      %s73 = sshll.u32 [#allocation10], 4
      %s74 = int_to_ptr.vmem [resolvable:$true] %s73
      %79 = dma.hbm_to_vmem [thread:$0]  %s72, 256, %s74, [#allocation11], 128, 128, 8
    $region17: #{tpu_custom_call.1} parent=1 // pred_fallthru
      _
    // Predicated region
    $region18: #{tpu_custom_call.1} parent=1 // pred_check
      _
    $region19: #{tpu_custom_call.1} parent=1 // pred_check_branch
      %81 = sbr.rel (0) target = $region21
    $region20: #{tpu_custom_call.1} parent=1 // pred_region
      %82 = dma.done [#allocation5], 256
    $region21: #{tpu_custom_call.1} parent=1 // pred_fallthru
      _
    // Predicated region
    $region22: #{tpu_custom_call.1} parent=1 // pred_check
      _
    $region23: #{tpu_custom_call.1} parent=1 // pred_check_branch
      %84 = sbr.rel (0) target = $region25
    $region24: #{tpu_custom_call.1} parent=1 // pred_region
      %85 = dma.done [#allocation8], 256
    $region25: #{tpu_custom_call.1} parent=1 // pred_fallthru
      _
    // Predicated region
    $region26: #{tpu_custom_call.1} parent=1 // pred_check
      _
    $region27: #{tpu_custom_call.1} parent=1 // pred_check_branch
      %87 = sbr.rel (0) target = $region29
    $region28: #{tpu_custom_call.1} parent=1 // pred_region
      %88 = dma.done [#allocation8], 256
    $region29: #{tpu_custom_call.1} parent=1 // pred_fallthru
      _
    // Predicated region
    $region30: #{tpu_custom_call.1} parent=1 // pred_check
      _
    $region31: #{tpu_custom_call.1} parent=1 // pred_check_branch
      %90 = sbr.rel (0) target = $region33
    $region32: #{tpu_custom_call.1} parent=1 // pred_region
      %91 = dma.done [#allocation11], 256
    $region33: #{tpu_custom_call.1} parent=1 // pred_fallthru
      _
    %s92 = sadd.s32 0, 0
    %s93 = smul.u32 2, %s92
    %s94 = sadd.s32 0, 0
    %s95 = smul.u32 2, %s94
    %s96 = sadd.s32 0, 0
    %s97 = smul.u32 2, %s96
    %s98 = sadd.s32 0, 0
    %s99 = smul.u32 2, %s98
    %p100 = scmp.eq.s32.totalorder 0, 0
    // Predicated region
    $region34: #{tpu_custom_call.1} parent=1 // pred_check
      %p101 = pneg %p100
    $region35: #{tpu_custom_call.1} parent=1 // pred_check_branch
      %103 = sbr.rel (%p101) target = $region37
    $region36: #{tpu_custom_call.1} parent=1 // pred_region
      %vm104 = vcmask 3072
      %105 = vst.msk [vmem:[#allocation2] sm:$0xf] %vm104, 0.0
      %106 = vst.msk [vmem:[#allocation2 + $0x4] sm:$0xf] %vm104, 0.0
      %107 = vst.msk [vmem:[#allocation3] sm:$0xf] %vm104, 0.0
      %108 = vst.msk [vmem:[#allocation3 + $0x4] sm:$0xf] %vm104, 0.0
    $region37: #{tpu_custom_call.1} parent=1 // pred_fallthru
      _
    %s109 = sadd.s32 0, 0
    %s110 = smul.u32 %s109, 256
    %v111 = vlaneseq
    %v112 = vand.u32 %v111, 127
    %v113 = vadd.s32 %v112, 128
    %v114 = vstv %s110
    %v115 = vadd.s32 %v114, %v112
    %v116 = vadd.s32 %v114, %v113
    %vm117 = vcmp.lt.s32.totalorder %v115, 200
    %vm118 = vcmp.lt.s32.totalorder %v116, 200
    %v119 = vld [vmem:[#allocation4] sm:$0xff]
    %v120 = vld [vmem:[#allocation4 + $0x8] sm:$0xff]
    %v121 = vld [vmem:[#allocation7] sm:$0xff]
    %v122 = vld [vmem:[#allocation7 + $0x8] sm:$0xff]
    %v123 = vld [vmem:[#allocation9] sm:$0xff]
    %v124 = vld [vmem:[#allocation9 + $0x8] sm:$0xff]
    %v125 = vld [vmem:[#allocation10] sm:$0xff]
    %v126 = vld [vmem:[#allocation10 + $0x8] sm:$0xff]
    %v127 = vsub.f32 %v125, %v121
    %v128 = vsub.f32 %v126, %v122
    %v129 = vmul.f32 %v121, 2.0
    %v130 = vmul.f32 %v122, 2.0
    %v131 = vmul.f32 %v129, 1.442695
    %v132 = vpow.pop %v131
    %v133 = vmul.f32 %v130, 1.442695
    %v134 = vpow.pop %v133
    %v135 = vsub.f32 %v119, %v123
    %v136 = vsub.f32 %v120, %v124
    %v137 = vmul.f32 %v135, %v135
    %v138 = vmul.f32 %v136, %v136
    %v139 = vadd.f32 %v132, %v137
    %v140 = vadd.f32 %v134, %v138
    %v141 = vmul.f32 %v139, 0.5
    %v142 = vmul.f32 %v140, 0.5
    %v143 = vmul.f32 %v125, -2.0
    %v144 = vmul.f32 %v126, -2.0
    %v145 = vmul.f32 %v143, 1.442695
    %v146 = vpow.pop %v145
    %v147 = vmul.f32 %v144, 1.442695
    %v148 = vpow.pop %v147
    %v149 = vmul.f32 %v141, %v146
    %v150 = vmul.f32 %v142, %v148
    %v151 = vadd.f32 %v127, %v149
    %v152 = vadd.f32 %v128, %v150
    %v153 = vsub.f32 %v151, 0.5
    %v154 = vsub.f32 %v152, 0.5
    %v155 = vld [vmem:[#allocation2] sm:$0xf]
    %v156 = vld [vmem:[#allocation2 + $0x4] sm:$0xf]
    %v159 = vcombine.high %v153, %v153
    %v160 = vcombine.high %v154, %v154
    %v163 = vsel %vm117, %v153, 0.0
    %v164 = vsel %vm118, %v159, 0.0
    %v165 = vsel %vm117, %v154, 0.0
    %v166 = vsel %vm118, %v160, 0.0
    %vm167 = vcmask 1043456
    %v168 = vsel %vm167, %v163, 0.0
    %v169 = vsel %vm167, %v164, 0.0
    %v170 = vadd.f32 %v168, %v169
    %171 = vadd.xlane.f32.xlu0 %v170
    %v172 = vpop.xlane.xlu0 %171
    %v173 = vsel %vm167, %v165, 0.0
    %v174 = vsel %vm167, %v166, 0.0
    %v175 = vadd.f32 %v173, %v174
    %176 = vadd.xlane.f32.xlu0 %v175
    %v177 = vpop.xlane.xlu0 %176
    %v178 = vadd.f32 %v155, %v172
    %v179 = vadd.f32 %v156, %v177
    %vm180 = vcmask 3072
    %181 = vst.msk [vmem:[#allocation2] sm:$0xf] %vm180, %v178
    %182 = vst.msk [vmem:[#allocation2 + $0x4] sm:$0xf] %vm180, %v179
    %v183 = vld [vmem:[#allocation3] sm:$0xf]
    %v184 = vld [vmem:[#allocation3 + $0x4] sm:$0xf]
    %v185 = vmul.f32 %v127, %v127
    %v186 = vmul.f32 %v128, %v128
    %v189 = vcombine.high %v185, %v185
    %v190 = vcombine.high %v186, %v186
    %v193 = vsel %vm117, %v185, 0.0
    %v194 = vsel %vm118, %v189, 0.0
    %v195 = vsel %vm117, %v186, 0.0
    %v196 = vsel %vm118, %v190, 0.0
    %v197 = vsel %vm167, %v193, 0.0
    %v198 = vsel %vm167, %v194, 0.0
    %v199 = vadd.f32 %v197, %v198
    %200 = vadd.xlane.f32.xlu0 %v199
    %v201 = vpop.xlane.xlu0 %200
    %v202 = vsel %vm167, %v195, 0.0
    %v203 = vsel %vm167, %v196, 0.0
    %v204 = vadd.f32 %v202, %v203
    %205 = vadd.xlane.f32.xlu0 %v204
    %v206 = vpop.xlane.xlu0 %205
    %v207 = vadd.f32 %v183, %v201
    %v208 = vadd.f32 %v184, %v206
    %209 = vst.msk [vmem:[#allocation3] sm:$0xf] %vm180, %v207
    %210 = vst.msk [vmem:[#allocation3 + $0x4] sm:$0xf] %vm180, %v208
    // Predicated region
    $region38: #{tpu_custom_call.1} parent=1 // pred_check
      %p211 = pneg %p100
    $region39: #{tpu_custom_call.1} parent=1 // pred_check_branch
      %213 = sbr.rel (%p211) target = $region41
    $region40: #{tpu_custom_call.1} parent=1 // pred_region
      %v214 = vld [vmem:[#allocation2] sm:$0xf]
      %v215 = vld [vmem:[#allocation2 + $0x4] sm:$0xf]
      %v216 = vsel %vm180, %v214, 0.0
      %v217 = vsel %vm180, %v215, 0.0
      %v218 = vadd.f32 %v216, %v217
      %219 = vadd.xlane.f32.xlu0 %v218
      %v220 = vpop.xlane.xlu0 %219
      %v221 = vrot.slane %v220, 4
      %v222 = vadd.f32 %v220, %v221
      %v223 = vrot.slane %v222, 2
      %v224 = vadd.f32 %v222, %v223
      %v225 = vrot.slane %v224, 1
      %v226 = vadd.f32 %v224, %v225
      %s227 = vtos %v226
      %s228 = scalar_lea.smem [#allocation12], 0
      %229 = sst [smem:[%s228]] %s227
      %v230 = vld [vmem:[#allocation3] sm:$0xf]
      %v231 = vld [vmem:[#allocation3 + $0x4] sm:$0xf]
      %v232 = vsel %vm180, %v230, 0.0
      %v233 = vsel %vm180, %v231, 0.0
      %v234 = vadd.f32 %v232, %v233
      %235 = vadd.xlane.f32.xlu0 %v234
      %v236 = vpop.xlane.xlu0 %235
      %v237 = vrot.slane %v236, 4
      %v238 = vadd.f32 %v236, %v237
      %v239 = vrot.slane %v238, 2
      %v240 = vadd.f32 %v238, %v239
      %v241 = vrot.slane %v240, 1
      %v242 = vadd.f32 %v240, %v241
      %s243 = vtos %v242
      %s244 = scalar_lea.smem [#allocation13], 0
      %245 = sst [smem:[%s244]] %s243
    $region41: #{tpu_custom_call.1} parent=1 // pred_fallthru
      _
    // Predicated region
    $region42: #{tpu_custom_call.1} parent=1 // pred_check
      _
    $region43: #{tpu_custom_call.1} parent=1 // pred_check_branch
      %247 = sbr.rel (0) target = $region45
    $region44: #{tpu_custom_call.1} parent=1 // pred_region
      %s249 = ssub.s32 16, 16
      %250 = vsyncadd [#allocation6], %s249
      %253 = dma.smem_to_hbm [#allocation12], 16, %s4, [#allocation6]
    $region45: #{tpu_custom_call.1} parent=1 // pred_fallthru
      _
    // Predicated region
    $region46: #{tpu_custom_call.1} parent=1 // pred_check
      _
    $region47: #{tpu_custom_call.1} parent=1 // pred_check_branch
      %255 = sbr.rel (0) target = $region49
    $region48: #{tpu_custom_call.1} parent=1 // pred_region
      %s257 = ssub.s32 16, 16
      %258 = vsyncadd [#allocation14], %s257
      %261 = dma.smem_to_hbm [#allocation13], 16, %s5, [#allocation14]
    $region49: #{tpu_custom_call.1} parent=1 // pred_fallthru
      _
    // Predicated region
    $region50: #{tpu_custom_call.1} parent=1 // pred_check
      _
    $region51: #{tpu_custom_call.1} parent=1 // pred_check_branch
      %263 = sbr.rel (0) target = $region53
    $region52: #{tpu_custom_call.1} parent=1 // pred_region
      %264 = dma.done [#allocation6], 16
    $region53: #{tpu_custom_call.1} parent=1 // pred_fallthru
      _
    // Predicated region
    $region54: #{tpu_custom_call.1} parent=1 // pred_check
      _
    $region55: #{tpu_custom_call.1} parent=1 // pred_check_branch
      %266 = sbr.rel (0) target = $region57
    $region56: #{tpu_custom_call.1} parent=1 // pred_region
      %267 = dma.done [#allocation14], 16
    $region57: #{tpu_custom_call.1} parent=1 // pred_fallthru
      _
    %268 = sfence
    %269 = vsyncpa [#allocation5], 1
    %270 = vsyncpa [#allocation8], 1
    %271 = vsyncpa [#allocation11], 1
    %272 = vsyncpa [#allocation6], 1
    %273 = vsyncpa [#allocation14], 1

</llo_original>
